<compile_context>
chip_gen: v5e
topology: v5e:2x2
jax: 0.10.0
libtpu: 0.0.40
codegen_flags: <defaults>
</compile_context>

<pallas_src>
import functools
import math

import jax
import jax.numpy as jnp
from jax.experimental import pallas as pl
from jax.experimental.pallas import tpu as pltpu


def _round_up(n: int, m: int) -> int:
    return ((n + m - 1) // m) * m


def _nbytes(shape, dtype) -> int:
    return math.prod(shape) * jnp.dtype(dtype).itemsize


def _vmem_capacity_bytes(default: int = 64 * 1024 * 1024) -> int:
    """Physical VMEM per core; conservative 64 MiB default if query fails."""
    try:
        info = pltpu.get_tpu_info()
        cap = getattr(info, "vmem_capacity_bytes", None)
        if cap:
            return int(cap)
    except Exception:
        pass
    return default


def _resident_spec(shape):
    """Constant-index (VMEM-resident) BlockSpec, single-buffered if supported."""
    index_map = lambda b: (0,) * len(shape)
    try:
        return pl.BlockSpec(shape, index_map, pipeline_mode=pl.Buffered(1))
    except (TypeError, AttributeError):
        # Older Pallas without pipeline_mode / Buffered: fall back to default.
        return pl.BlockSpec(shape, index_map)


def mlp_kernel(x_ref, w1_ref, b1_ref, w2_ref, b2_ref, o_ref):
    # Layer 1: cast the f32 activation tile to bf16 on the fly (no wrapper-side
    # cast round trip), MXU matmul with f32 accumulate, bias + ReLU in f32.
    x = x_ref[...].astype(w1_ref.dtype)
    h = jnp.dot(x, w1_ref[...], preferred_element_type=jnp.float32)
    h = jnp.maximum(h + b1_ref[...], 0.0)
    # Layer 2: MXU matmul with a lane-dense (128-padded) output column block.
    y = jnp.dot(h.astype(w2_ref.dtype), w2_ref[...],
                preferred_element_type=jnp.float32)
    o_ref[...] = (y + b2_ref[...]).astype(o_ref.dtype)


def prepare_params(w1, b1, w2, b2, *, mxu_dtype=jnp.bfloat16):
    """Pad + cast the weights once (hoisted out of the per-call forward).

    w1: (F, H) f32   (already transposed vs. torch.nn.Linear)
    b1: (1, H) f32
    w2: (H, O) f32
    b2: (1, O) f32
    """
    F, H = w1.shape
    O = w2.shape[1]
    F_p, H_p, O_p = _round_up(F, 128), _round_up(H, 128), _round_up(O, 128)
    return {
        "w1": jnp.pad(w1, ((0, F_p - F), (0, H_p - H))).astype(mxu_dtype),
        "b1": jnp.pad(b1, ((0, 0), (0, H_p - H))).astype(jnp.float32),
        "w2": jnp.pad(w2, ((0, H_p - H), (0, O_p - O))).astype(mxu_dtype),
        "b2": jnp.pad(b2, ((0, 0), (0, O_p - O))).astype(jnp.float32),
        "n_feature": F,
        "n_hidden": H,
        "n_output": O,
    }


def net_forward(x, params, *, tile_b: int = 512):
    """Forward pass of Net.  x: (B, F) f32; returns (B, O) in x.dtype."""
    w1_p, b1_p = params["w1"], params["b1"]
    w2_p, b2_p = params["w2"], params["b2"]
    F, O = params["n_feature"], params["n_output"]
    F_p, H_p = w1_p.shape
    O_p = w2_p.shape[1]
    mxu_dtype = w1_p.dtype

    B = x.shape[0]
    out_dtype = x.dtype

    # --- batch tile: multiples of 16 (bf16 sublane packing); >=2 grid steps
    # when the batch allows so v7x's two TensorCores both get work.
    tile_b = _round_up(max(16, min(tile_b, B)), 16)
    if B >= 32 and _round_up(B, tile_b) // tile_b < 2:
        tile_b = _round_up(-(-B // 2), 16)

    # --- VMEM budget per generation (never ask for 100% of physical VMEM) ---
    budget = int(0.85 * _vmem_capacity_bytes())

    def vmem_need(tb):
        return (2 * _nbytes((tb, F_p), x.dtype)        # x tiles (double-buffered)
                + 2 * _nbytes((tb, O_p), out_dtype)    # out tiles (double-buffered)
                + _nbytes((F_p, H_p), mxu_dtype)       # W1 (single-buffered)
                + _nbytes((H_p, O_p), mxu_dtype)       # W2 (single-buffered)
                + _nbytes((1, H_p), jnp.float32)       # b1
                + _nbytes((1, O_p), jnp.float32)       # b2
                + _nbytes((tb, F_p), mxu_dtype)        # in-kernel bf16 x
                + _nbytes((tb, H_p), jnp.float32)      # h (f32)
                + _nbytes((tb, H_p), mxu_dtype)        # h (bf16 recast)
                + _nbytes((tb, O_p), jnp.float32))     # y (f32)

    while vmem_need(tile_b) > budget and tile_b > 16:
        tile_b = max(16, _round_up(tile_b // 2, 16))
    # TODO(synk): add a K-tiled reduction-grid fallback (f32 accumulator,
    # dimension_semantics=("parallel","arbitrary")) for weight matrices too
    # large to keep VMEM-resident on v7x (F ~ H ~ 4096+ in bf16).

    vmem_limit = int(min(budget, max(32 * 1024 * 1024, 1.25 * vmem_need(tile_b))))

    B_p = _round_up(B, tile_b)
    x_p = x
    if B_p != B or F_p != F:
        # Padding stays in f32; the bf16 cast happens inside the kernel.
        x_p = jnp.pad(x, ((0, B_p - B), (0, F_p - F)))
    num_b_tiles = B_p // tile_b

    cost = pl.CostEstimate(
        flops=2 * B_p * (F_p * H_p + H_p * O_p),
        transcendentals=0,
        bytes_accessed=(_nbytes((B_p, F_p), x.dtype)
                        + _nbytes((F_p, H_p), mxu_dtype)
                        + _nbytes((H_p, O_p), mxu_dtype)
                        + _nbytes((1, H_p), jnp.float32)
                        + _nbytes((1, O_p), jnp.float32)
                        + _nbytes((B_p, O_p), out_dtype)),
    )

    out_padded = pl.pallas_call(
        mlp_kernel,
        out_shape=jax.ShapeDtypeStruct((B_p, O_p), out_dtype),
        grid=(num_b_tiles,),
        in_specs=[
            pl.BlockSpec((tile_b, F_p), lambda b: (b, 0)),   # x tile (pipelined)
            _resident_spec((F_p, H_p)),                      # W1 (resident)
            _resident_spec((1, H_p)),                        # b1 (resident)
            _resident_spec((H_p, O_p)),                      # W2 (resident)
            _resident_spec((1, O_p)),                        # b2 (resident)
        ],
        out_specs=pl.BlockSpec((tile_b, O_p), lambda b: (b, 0)),
        compiler_params=pltpu.CompilerParams(
            dimension_semantics=("parallel",),
            vmem_limit_bytes=vmem_limit,
        ),
        cost_estimate=cost,
    )(x_p, w1_p, b1_p, w2_p, b2_p)

    return out_padded[:B, :O]


def init_params(key, n_feature, n_hidden, n_output):
    """Deterministic init mimicking torch.nn.Linear (uniform +/- 1/sqrt(fan_in)).

    Weights are returned already transposed to (in, out) for the kernel.
    """
    k1, k2, k3, k4 = jax.random.split(key, 4)
    bound1 = 1.0 / jnp.sqrt(jnp.float32(n_feature))
    bound2 = 1.0 / jnp.sqrt(jnp.float32(n_hidden))
    w1 = jax.random.uniform(k1, (n_feature, n_hidden), jnp.float32, -bound1, bound1)
    b1 = jax.random.uniform(k2, (1, n_hidden), jnp.float32, -bound1, bound1)
    w2 = jax.random.uniform(k3, (n_hidden, n_output), jnp.float32, -bound2, bound2)
    b2 = jax.random.uniform(k4, (1, n_output), jnp.float32, -bound2, bound2)
    return w1, b1, w2, b2


if __name__ == "__main__":
    # Small shapes consistent with the module: Net(n_feature, n_hidden, n_output)
    batch, n_feature, n_hidden, n_output = 8, 16, 32, 1

    key = jax.random.PRNGKey(0)
    kx, kp = jax.random.split(key)
    x = jax.random.normal(kx, (batch, n_feature), jnp.float32)
    w1, b1, w2, b2 = init_params(kp, n_feature, n_hidden, n_output)

    # Pad / cast the weights ONCE (hoisted out of the forward), then jit the
    # forward with the prepared params closed over.
    params = prepare_params(w1, b1, w2, b2)
    fwd = jax.jit(functools.partial(net_forward, params=params))

    out = fwd(x)
    out = jax.block_until_ready(out)

    # Reference 1: matches the kernel's bf16-MXU / f32-accumulate numerics.
    f32 = jnp.float32
    xb = x.astype(jnp.bfloat16).astype(f32)
    w1b = w1.astype(jnp.bfloat16).astype(f32)
    w2b = w2.astype(jnp.bfloat16).astype(f32)
    h_ref = jnp.maximum(xb @ w1b + b1, 0.0)
    ref_bf16 = h_ref.astype(jnp.bfloat16).astype(f32) @ w2b + b2
    # Reference 2: full-precision forward of the original module.
    ref_f32 = jnp.maximum(x @ w1 + b1, 0.0) @ w2 + b2

    assert out.shape == (batch, n_output)
    assert jnp.allclose(out, ref_bf16, atol=1e-3, rtol=1e-3)
    assert jnp.allclose(out, ref_f32, atol=5e-2, rtol=5e-2)

    print("KERNEL_OK")
</pallas_src>

<mosaic_0001>
module attributes {stable_mosaic.version = 11 : i64} {
  func.func @mlp_kernel(%arg0: i32, %arg1: memref<16x128xf32, #tpu.memory_space<vmem>>, %arg2: memref<128x128xbf16, #tpu.memory_space<vmem>>, %arg3: memref<1x128xf32, #tpu.memory_space<vmem>>, %arg4: memref<128x128xbf16, #tpu.memory_space<vmem>>, %arg5: memref<1x128xf32, #tpu.memory_space<vmem>>, %arg6: memref<16x128xf32, #tpu.memory_space<vmem>>) attributes {dimension_semantics = [#tpu.dimension_semantics<parallel>], iteration_bounds = array<i64: 1>, scalar_prefetch = 0 : i64, scratch_operands = 0 : i64, tpu.core_type = #tpu.core_type<tc>, window_params = [{transform_indices = @transform_0, window_bounds = array<i64: 16, 128>}, {pipeline_mode = #tpu.pipeline_mode<synchronous>, transform_indices = @transform_1, window_bounds = array<i64: 128, 128>}, {pipeline_mode = #tpu.pipeline_mode<synchronous>, transform_indices = @transform_2, window_bounds = array<i64: 1, 128>}, {pipeline_mode = #tpu.pipeline_mode<synchronous>, transform_indices = @transform_3, window_bounds = array<i64: 128, 128>}, {pipeline_mode = #tpu.pipeline_mode<synchronous>, transform_indices = @transform_4, window_bounds = array<i64: 1, 128>}, {transform_indices = @transform_5, window_bounds = array<i64: 16, 128>}]} {
    %c0 = arith.constant 0 : index
    %c0_0 = arith.constant 0 : index
    %0 = vector.load %arg1[%c0, %c0_0] : memref<16x128xf32, #tpu.memory_space<vmem>>, vector<16x128xf32>
    %1 = arith.truncf %0 : vector<16x128xf32> to vector<16x128xbf16>
    %c0_1 = arith.constant 0 : index
    %c0_2 = arith.constant 0 : index
    %2 = vector.load %arg2[%c0_1, %c0_2] : memref<128x128xbf16, #tpu.memory_space<vmem>>, vector<128x128xbf16>
    %cst = arith.constant dense<0.000000e+00> : vector<16x128xf32>
    %3 = tpu.matmul %1, %2, %cst {dimension_numbers = #tpu.dot_dimension_numbers<[1], [0], [0], [1], [0, 0, 1, 1], [], []>} : vector<16x128xbf16>, vector<128x128xbf16>, vector<16x128xf32> -> vector<16x128xf32>
    %c0_3 = arith.constant 0 : index
    %c0_4 = arith.constant 0 : index
    %4 = vector.load %arg3[%c0_3, %c0_4] : memref<1x128xf32, #tpu.memory_space<vmem>>, vector<1x128xf32>
    %5 = vector.broadcast %4 : vector<1x128xf32> to vector<16x128xf32>
    %6 = arith.addf %3, %5 : vector<16x128xf32>
    %cst_5 = arith.constant 0.000000e+00 : f32
    %7 = vector.broadcast %cst_5 : f32 to vector<16x128xf32>
    %8 = arith.maximumf %6, %7 : vector<16x128xf32>
    %9 = arith.truncf %8 : vector<16x128xf32> to vector<16x128xbf16>
    %c0_6 = arith.constant 0 : index
    %c0_7 = arith.constant 0 : index
    %10 = vector.load %arg4[%c0_6, %c0_7] : memref<128x128xbf16, #tpu.memory_space<vmem>>, vector<128x128xbf16>
    %cst_8 = arith.constant dense<0.000000e+00> : vector<16x128xf32>
    %11 = tpu.matmul %9, %10, %cst_8 {dimension_numbers = #tpu.dot_dimension_numbers<[1], [0], [0], [1], [0, 0, 1, 1], [], []>} : vector<16x128xbf16>, vector<128x128xbf16>, vector<16x128xf32> -> vector<16x128xf32>
    %c0_9 = arith.constant 0 : index
    %c0_10 = arith.constant 0 : index
    %12 = vector.load %arg5[%c0_9, %c0_10] : memref<1x128xf32, #tpu.memory_space<vmem>>, vector<1x128xf32>
    %13 = vector.broadcast %12 : vector<1x128xf32> to vector<16x128xf32>
    %14 = arith.addf %11, %13 : vector<16x128xf32>
    %c0_11 = arith.constant 0 : index
    %c0_12 = arith.constant 0 : index
    %15 = vector.load %arg6[%c0_11, %c0_12] : memref<16x128xf32, #tpu.memory_space<vmem>>, vector<16x128xf32>
    tpu.vector_store %arg6[%c0_11, %c0_12], %14 {strides = array<i32>} : memref<16x128xf32, #tpu.memory_space<vmem>>, vector<16x128xf32>,
    return
  }
  func.func @transform_0(%arg0: i32) -> (i32, i32) {
    %c0_i32 = arith.constant 0 : i32
    %c0_i32_0 = arith.constant 0 : i32
    return %arg0, %c0_i32 : i32, i32
  }
  func.func @transform_1(%arg0: i32) -> (i32, i32) {
    %c0_i32 = arith.constant 0 : i32
    %c0_i32_0 = arith.constant 0 : i32
    %c0_i32_1 = arith.constant 0 : i32
    return %c0_i32, %c0_i32_0 : i32, i32
  }
  func.func @transform_2(%arg0: i32) -> (i32, i32) {
    %c0_i32 = arith.constant 0 : i32
    %c0_i32_0 = arith.constant 0 : i32
    %c0_i32_1 = arith.constant 0 : i32
    return %c0_i32, %c0_i32_0 : i32, i32
  }
  func.func @transform_3(%arg0: i32) -> (i32, i32) {
    %c0_i32 = arith.constant 0 : i32
    %c0_i32_0 = arith.constant 0 : i32
    %c0_i32_1 = arith.constant 0 : i32
    return %c0_i32, %c0_i32_0 : i32, i32
  }
  func.func @transform_4(%arg0: i32) -> (i32, i32) {
    %c0_i32 = arith.constant 0 : i32
    %c0_i32_0 = arith.constant 0 : i32
    %c0_i32_1 = arith.constant 0 : i32
    return %c0_i32, %c0_i32_0 : i32, i32
  }
  func.func @transform_5(%arg0: i32) -> (i32, i32) {
    %c0_i32 = arith.constant 0 : i32
    %c0_i32_0 = arith.constant 0 : i32
    return %arg0, %c0_i32 : i32, i32
  }
}

</mosaic_0001>

<llo_original>
// kernel: net_forward.1
$region0: #{net_forward.1}
  #allocation0 [shape = 'u32[]', space=smem, size = 0x4, offset = 0x4, fixed_abs, tag = 'smem constant byte address 0x4 - core index']
  #allocation1 [shape = 'u32[72,128]{1,0:T(1,128)}', space=vmem, size = 0x9000, scoped, tag = 'internal scratch']
  %s0 = inlined_call_operand.vmem [shape: f32[16,128], index: 0, kind: input, shape index: {}]
  %s1 = inlined_call_operand.hbm [shape: bf16[128,128], index: 1, kind: input, shape index: {}]
  %s2 = inlined_call_operand.vmem [shape: f32[1,128], index: 2, kind: input, shape index: {}]
  %s3 = inlined_call_operand.hbm [shape: bf16[128,128], index: 3, kind: input, shape index: {}]
  %s4 = inlined_call_operand.vmem [shape: f32[1,128], index: 4, kind: input, shape index: {}]
  %s5 = inlined_call_operand.vmem [shape: f32[16,128], index: 5, kind: output, shape index: {}]
  %s6 = sld [smem:[#allocation0]]
  $region38: #{net_forward.1} parent=0
    _
  %s8 = ssub.s32 1, %s6
  %s9 = scalar_select 0, %s8, %s6
  $region1: #{net_forward.1} parent=0
    #allocation2 [shape = 'u8[32768]{0}', space=vmem, size = 0x8000, scoped, tag = 'input window, operand 1, single buffered']
    #allocation3 [shape = 's32[1]{0}', space=sflag, size = 0x4, scoped, tag = 'scoped memory for net_forward.1']
    #allocation4 [shape = 'u8[32768]{0}', space=vmem, size = 0x8000, scoped, tag = 'input window, operand 3, single buffered']
    #allocation5 [shape = 's32[1]{0}', space=sflag, size = 0x4, scoped, tag = 'scoped memory for net_forward.1']
    %10 = vsyncpa [#allocation3], 0
    %11 = vsyncpa [#allocation5], 0
    // Predicated region
    $region2: #{net_forward.1} parent=1 // pred_check
      _
    $region3: #{net_forward.1} parent=1 // pred_check_branch
      %13 = sbr.rel (0) target = $region5
    $region4: #{net_forward.1} parent=1 // pred_region
      _
    $region5: #{net_forward.1} parent=1 // pred_fallthru
      _
    // Predicated region
    $region6: #{net_forward.1} parent=1 // pred_check
      _
    $region7: #{net_forward.1} parent=1 // pred_check_branch
      %15 = sbr.rel (0) target = $region9
    $region8: #{net_forward.1} parent=1 // pred_region
      %17 = vsyncadd [#allocation3], 0
      %s18 = sshll.u32 %s1, 4
      %s19 = int_to_ptr.hbm [resolvable:$true] %s18
      %s20 = sshll.u32 [#allocation2], 4
      %s21 = int_to_ptr.vmem [resolvable:$true] %s20
      %26 = dma.hbm_to_vmem [thread:$0]  %s19, 1024, %s21, [#allocation3], 64, 64, 4
    $region9: #{net_forward.1} parent=1 // pred_fallthru
      _
    // Predicated region
    $region10: #{net_forward.1} parent=1 // pred_check
      _
    $region11: #{net_forward.1} parent=1 // pred_check_branch
      %28 = sbr.rel (0) target = $region13
    $region12: #{net_forward.1} parent=1 // pred_region
      _
    $region13: #{net_forward.1} parent=1 // pred_fallthru
      _
    // Predicated region
    $region14: #{net_forward.1} parent=1 // pred_check
      _
    $region15: #{net_forward.1} parent=1 // pred_check_branch
      %30 = sbr.rel (0) target = $region17
    $region16: #{net_forward.1} parent=1 // pred_region
      %32 = vsyncadd [#allocation5], 0
      %s33 = sshll.u32 %s3, 4
      %s34 = int_to_ptr.hbm [resolvable:$true] %s33
      %s35 = sshll.u32 [#allocation4], 4
      %s36 = int_to_ptr.vmem [resolvable:$true] %s35
      %41 = dma.hbm_to_vmem [thread:$0]  %s34, 1024, %s36, [#allocation5], 64, 64, 4
    $region17: #{net_forward.1} parent=1 // pred_fallthru
      _
    // Predicated region
    $region18: #{net_forward.1} parent=1 // pred_check
      _
    $region19: #{net_forward.1} parent=1 // pred_check_branch
      %43 = sbr.rel (0) target = $region21
    $region20: #{net_forward.1} parent=1 // pred_region
      _
    $region21: #{net_forward.1} parent=1 // pred_fallthru
      _
    // Predicated region
    $region22: #{net_forward.1} parent=1 // pred_check
      _
    $region23: #{net_forward.1} parent=1 // pred_check_branch
      %45 = sbr.rel (0) target = $region25
    $region24: #{net_forward.1} parent=1 // pred_region
      %47 = dma.done [#allocation3], 1024
    $region25: #{net_forward.1} parent=1 // pred_fallthru
      _
    // Predicated region
    $region26: #{net_forward.1} parent=1 // pred_check
      _
    $region27: #{net_forward.1} parent=1 // pred_check_branch
      %49 = sbr.rel (0) target = $region29
    $region28: #{net_forward.1} parent=1 // pred_region
      %51 = dma.done [#allocation5], 1024
    $region29: #{net_forward.1} parent=1 // pred_fallthru
      _
    %v52 = vld [vmem:[%s0] sm:$0xff]
    %v53 = vld [vmem:[%s0 + $0x8] sm:$0xff]
    %v54 = vpack.c.bf16 %v53, %v52
    %v55 = vld [vmem:[#allocation2] sm:$0xf]
    %v56 = vld [vmem:[#allocation2 + $0x4] sm:$0xf]
    %v57 = vld [vmem:[#allocation2 + $0x8] sm:$0xf]
    %v58 = vld [vmem:[#allocation2 + $0xc] sm:$0xf]
    %v59 = vld [vmem:[#allocation2 + $0x10] sm:$0xf]
    %v60 = vld [vmem:[#allocation2 + $0x14] sm:$0xf]
    %v61 = vld [vmem:[#allocation2 + $0x18] sm:$0xf]
    %v62 = vld [vmem:[#allocation2 + $0x1c] sm:$0xf]
    %v63 = vld [vmem:[#allocation2 + $0x20] sm:$0xf]
    %v64 = vld [vmem:[#allocation2 + $0x24] sm:$0xf]
    %v65 = vld [vmem:[#allocation2 + $0x28] sm:$0xf]
    %v66 = vld [vmem:[#allocation2 + $0x2c] sm:$0xf]
    %v67 = vld [vmem:[#allocation2 + $0x30] sm:$0xf]
    %v68 = vld [vmem:[#allocation2 + $0x34] sm:$0xf]
    %v69 = vld [vmem:[#allocation2 + $0x38] sm:$0xf]
    %v70 = vld [vmem:[#allocation2 + $0x3c] sm:$0xf]
    %v71 = vld [vmem:[%s2] sm:$0x1]
    %v73 = vperm.slane %v71, 0
    %v91 = vunpack.c.l.b16 %v55
    %v92 = vunpack.c.l.b16 %v56
    %v93 = vunpack.c.l.b16 %v57
    %v94 = vunpack.c.l.b16 %v58
    %v95 = vunpack.c.l.b16 %v59
    %v96 = vunpack.c.l.b16 %v60
    %v97 = vunpack.c.l.b16 %v61
    %v98 = vunpack.c.l.b16 %v62
    %v99 = vunpack.c.l.b16 %v63
    %v100 = vunpack.c.l.b16 %v64
    %v101 = vunpack.c.l.b16 %v65
    %v102 = vunpack.c.l.b16 %v66
    %v103 = vunpack.c.l.b16 %v67
    %v104 = vunpack.c.l.b16 %v68
    %v105 = vunpack.c.l.b16 %v69
    %v106 = vunpack.c.l.b16 %v70
    %v107 = vpack.c.b16 %v92, %v91
    %v108 = vpack.c.b16 %v94, %v93
    %v109 = vpack.c.b16 %v96, %v95
    %v110 = vpack.c.b16 %v98, %v97
    %v111 = vpack.c.b16 %v100, %v99
    %v112 = vpack.c.b16 %v102, %v101
    %v113 = vpack.c.b16 %v104, %v103
    %v114 = vpack.c.b16 %v106, %v105
    %123 = vmatpush.bf16.msra.mxu0 %v114
    %124 = vmatpush.bf16.msra.mxu0 %v113
    %125 = vmatpush.bf16.msra.mxu0 %v112
    %126 = vmatpush.bf16.msra.mxu0 %v111
    %127 = vmatpush.bf16.msra.mxu0 %v110
    %128 = vmatpush.bf16.msra.mxu0 %v109
    %129 = vmatpush.bf16.msra.mxu0 %v108
    %130 = vmatpush.bf16.msra.mxu0 %v107
    %131 = vmatmul.bf16.gmra.mxu0 %v54
    %v132 = vpop.f32.mrf.mxu0
    %v133 = vadd.f32 %v73, %v132
    %v134 = vpop.f32.mrf.mxu0
    %v135 = vadd.f32 %v73, %v134
    %136 = vdwg.mxu0
    %v137 = vmax.f32 %v133, 0.0
    %v138 = vmax.f32 %v135, 0.0
    %v139 = vpack.c.bf16 %v138, %v137
    %v140 = vld [vmem:[#allocation4] sm:$0xf]
    %v141 = vld [vmem:[#allocation4 + $0x4] sm:$0xf]
    %v142 = vld [vmem:[#allocation4 + $0x8] sm:$0xf]
    %v143 = vld [vmem:[#allocation4 + $0xc] sm:$0xf]
    %v144 = vld [vmem:[#allocation4 + $0x10] sm:$0xf]
    %v145 = vld [vmem:[#allocation4 + $0x14] sm:$0xf]
    %v146 = vld [vmem:[#allocation4 + $0x18] sm:$0xf]
    %v147 = vld [vmem:[#allocation4 + $0x1c] sm:$0xf]
    %v148 = vld [vmem:[#allocation4 + $0x20] sm:$0xf]
    %v149 = vld [vmem:[#allocation4 + $0x24] sm:$0xf]
    %v150 = vld [vmem:[#allocation4 + $0x28] sm:$0xf]
    %v151 = vld [vmem:[#allocation4 + $0x2c] sm:$0xf]
    %v152 = vld [vmem:[#allocation4 + $0x30] sm:$0xf]
    %v153 = vld [vmem:[#allocation4 + $0x34] sm:$0xf]
    %v154 = vld [vmem:[#allocation4 + $0x38] sm:$0xf]
    %v155 = vld [vmem:[#allocation4 + $0x3c] sm:$0xf]
    %v156 = vld [vmem:[%s4] sm:$0x1]
    %v158 = vperm.slane %v156, 0
    %v176 = vunpack.c.l.b16 %v140
    %v177 = vunpack.c.l.b16 %v141
    %v178 = vunpack.c.l.b16 %v142
    %v179 = vunpack.c.l.b16 %v143
    %v180 = vunpack.c.l.b16 %v144
    %v181 = vunpack.c.l.b16 %v145
    %v182 = vunpack.c.l.b16 %v146
    %v183 = vunpack.c.l.b16 %v147
    %v184 = vunpack.c.l.b16 %v148
    %v185 = vunpack.c.l.b16 %v149
    %v186 = vunpack.c.l.b16 %v150
    %v187 = vunpack.c.l.b16 %v151
    %v188 = vunpack.c.l.b16 %v152
    %v189 = vunpack.c.l.b16 %v153
    %v190 = vunpack.c.l.b16 %v154
    %v191 = vunpack.c.l.b16 %v155
    %v192 = vpack.c.b16 %v177, %v176
    %v193 = vpack.c.b16 %v179, %v178
    %v194 = vpack.c.b16 %v181, %v180
    %v195 = vpack.c.b16 %v183, %v182
    %v196 = vpack.c.b16 %v185, %v184
    %v197 = vpack.c.b16 %v187, %v186
    %v198 = vpack.c.b16 %v189, %v188
    %v199 = vpack.c.b16 %v191, %v190
    %208 = vmatpush.bf16.msra.mxu0 %v199
    %209 = vmatpush.bf16.msra.mxu0 %v198
    %210 = vmatpush.bf16.msra.mxu0 %v197
    %211 = vmatpush.bf16.msra.mxu0 %v196
    %212 = vmatpush.bf16.msra.mxu0 %v195
    %213 = vmatpush.bf16.msra.mxu0 %v194
    %214 = vmatpush.bf16.msra.mxu0 %v193
    %215 = vmatpush.bf16.msra.mxu0 %v192
    %216 = vmatmul.bf16.gmra.mxu0 %v139
    %v217 = vpop.f32.mrf.mxu0
    %v218 = vadd.f32 %v158, %v217
    %v219 = vpop.f32.mrf.mxu0
    %v220 = vadd.f32 %v158, %v219
    %221 = vdwg.mxu0
    %222 = vst [vmem:[%s5] sm:$0xff] %v218
    %223 = vst [vmem:[%s5 + $0x8] sm:$0xff] %v220
    // Predicated region
    $region30: #{net_forward.1} parent=1 // pred_check
      _
    $region31: #{net_forward.1} parent=1 // pred_check_branch
      %225 = sbr.rel (0) target = $region33
    $region32: #{net_forward.1} parent=1 // pred_region
      _
    $region33: #{net_forward.1} parent=1 // pred_fallthru
      _
    // Predicated region
    $region34: #{net_forward.1} parent=1 // pred_check
      _
    $region35: #{net_forward.1} parent=1 // pred_check_branch
      %227 = sbr.rel (0) target = $region37
    $region36: #{net_forward.1} parent=1 // pred_region
      _
    $region37: #{net_forward.1} parent=1 // pred_fallthru
      _
    %228 = vsyncpa [#allocation3], 1
    %229 = vsyncpa [#allocation5], 1

</llo_original>
